<compile_context>
chip_gen: v7x
topology: tpu7x:2x2x1
jax: 0.10.0
libtpu: 0.0.40
codegen_flags: <defaults>
</compile_context>

<pallas_src>
import jax
import jax.numpy as jnp
from jax import lax
from jax.experimental import pallas as pl
from jax.experimental.pallas import tpu as pltpu

EPS = 1e-5            # nn.LayerNorm default eps
MAX_ROW_TILE = 1024   # sweepable; 512-1024 rows ~ HBM roofline per measured data


# ---------------------------------------------------------------------------
# In-kernel helpers
# ---------------------------------------------------------------------------
def _layernorm(x, gamma, beta):
    """nn.LayerNorm over the last dim (f32 math, eps=1e-5). No padding, no masks."""
    mu = jnp.mean(x, axis=-1, keepdims=True)
    diff = x - mu
    var = jnp.mean(diff * diff, axis=-1, keepdims=True)
    return diff * lax.rsqrt(var + EPS) * gamma + beta


def make_fused_kernel(num_branches, num_categorical):
    """Fused kernel. Ref order:
         x_0..x_{K-1}, cat_0..cat_{C-1},
         (w1_k, b1_k, g_k, be_k) * K, w2_all, b2_sum,
         g0, be0, w, b, g1, be1,
         o_ref
    """
    def kernel(*refs):
        x_refs = refs[:num_branches]
        cat_refs = refs[num_branches:num_branches + num_categorical]
        rest = refs[num_branches + num_categorical:]
        o_ref = rest[-1]
        prm = rest[:-1]

        idx = 0
        h_list = []
        # --- per-branch: Linear -> LayerNorm -> ReLU --------------------------
        for k in range(num_branches):
            w1, b1, g, be = (r[...] for r in prm[idx:idx + 4])
            idx += 4
            h = jnp.dot(x_refs[k][...], w1,
                        preferred_element_type=jnp.float32) + b1
            h = jnp.maximum(_layernorm(h, g, be), 0.0)
            h_list.append(h)

        # --- block-diagonal fused second Linear over all branches -------------
        w2_all = prm[idx][...]      # [K*D, D] (W2_k stacked vertically)
        b2_sum = prm[idx + 1][...]  # [1, D]   (sum of per-branch biases)
        idx += 2
        h_cat = h_list[0] if num_branches == 1 else jnp.concatenate(h_list, axis=-1)
        acc = jnp.dot(h_cat, w2_all, preferred_element_type=jnp.float32) + b2_sum

        # --- categorical inputs (skipped entirely when None) ------------------
        for c in range(num_categorical):
            acc = acc + cat_refs[c][...]

        # --- aggregation head: LayerNorm -> ReLU -> Linear -> LayerNorm -------
        g0, be0, wa, ba, g1, be1 = (r[...] for r in prm[idx:idx + 6])
        h = jnp.maximum(_layernorm(acc, g0, be0), 0.0)
        h = jnp.dot(h, wa, preferred_element_type=jnp.float32) + ba
        o_ref[...] = _layernorm(h, g1, be1)

    return kernel


# ---------------------------------------------------------------------------
# Wrapper-side helpers (tiling / VMEM sizing)
# ---------------------------------------------------------------------------
def _choose_tiling(n, max_tile=MAX_ROW_TILE):
    """Row tile (multiple of 8) and padded row count.  Cap the tile at ~n/2 so the
    grid has >= 2 steps whenever possible (v7x megacore sharding)."""
    tm = max_tile
    while tm > 8 and 2 * tm > n:
        tm //= 2
    tm = max(tm, 8)
    n_pad = pl.cdiv(n, tm) * tm
    return tm, n_pad


def _vmem_limit_bytes(tm, in_cols, d, num_cat, param_bytes):
    # Double-buffered activation streams (inputs + output) + resident params.
    act = sum(2 * tm * c * 4 for c in in_cols)
    act += num_cat * 2 * tm * d * 4
    act += 2 * tm * d * 4
    need = act + 2 * param_bytes
    # Generous margin, floor 8 MiB, ceiling 64 MiB (v7x physical VMEM).
    return int(min(max(4 * need + (2 << 20), 8 << 20), 64 << 20))


# ---------------------------------------------------------------------------
# Parameter init (mirrors nn.Linear / nn.LayerNorm) + one-time kernel packing
# ---------------------------------------------------------------------------
def _init_linear(key, fan_in, fan_out):
    kw, kb = jax.random.split(key)
    bound = 1.0 / jnp.sqrt(jnp.float32(fan_in))
    w = jax.random.uniform(kw, (fan_in, fan_out), jnp.float32, -bound, bound)
    b = jax.random.uniform(kb, (1, fan_out), jnp.float32, -bound, bound)
    return w, b


def init_params(key, in_channels, out_channel):
    params = {"branches": [], "aggr": {}}
    for in_ch in in_channels:
        key, k1, k2 = jax.random.split(key, 3)
        w1, b1 = _init_linear(k1, in_ch, out_channel)
        w2, b2 = _init_linear(k2, out_channel, out_channel)
        params["branches"].append({
            "w1": w1, "b1": b1,
            "g": jnp.ones((1, out_channel), jnp.float32),
            "be": jnp.zeros((1, out_channel), jnp.float32),
            "w2": w2, "b2": b2,
        })
    key, ka = jax.random.split(key)
    wa, ba = _init_linear(ka, out_channel, out_channel)
    params["aggr"] = {
        "g0": jnp.ones((1, out_channel), jnp.float32),
        "be0": jnp.zeros((1, out_channel), jnp.float32),
        "w": wa, "b": ba,
        "g1": jnp.ones((1, out_channel), jnp.float32),
        "be1": jnp.zeros((1, out_channel), jnp.float32),
    }
    return params


def prepare_params(params):
    """One-time packing into the kernel-ready layout (stacked W2, summed b2)."""
    d = params["aggr"]["w"].shape[1]
    prepared = {"out_channel": d, "branches": []}
    w2s, b2_sum = [], None
    for br in params["branches"]:
        prepared["branches"].append(
            {"w1": br["w1"], "b1": br["b1"], "g": br["g"], "be": br["be"]})
        w2s.append(br["w2"])
        b2_sum = br["b2"] if b2_sum is None else b2_sum + br["b2"]
    prepared["w2_all"] = jnp.concatenate(w2s, axis=0)   # [K*D, D]
    prepared["b2_sum"] = b2_sum                         # [1, D]
    a = params["aggr"]
    prepared.update(g0=a["g0"], be0=a["be0"], w=a["w"], b=a["b"],
                    g1=a["g1"], be1=a["be1"])
    return prepared


# ---------------------------------------------------------------------------
# Forward pass: single fused pallas_call
# ---------------------------------------------------------------------------
def multiple_input_embedding(prepared, continuous_inputs, categorical_inputs=None):
    d = prepared["out_channel"]
    branches = prepared["branches"]
    k = len(branches)
    cats = list(categorical_inputs) if categorical_inputs is not None else []

    n = continuous_inputs[0].shape[0]
    tm, n_pad = _choose_tiling(n)
    grid = (n_pad // tm,)

    def pad_rows(a):
        a = jnp.asarray(a, jnp.float32)
        if a.shape[0] == n_pad:
            return a
        return jnp.pad(a, ((0, n_pad - a.shape[0]), (0, 0)))

    def act_spec(cols):
        return pl.BlockSpec((tm, cols), lambda i: (i, 0))

    def par_spec(shape):
        return pl.BlockSpec(shape, lambda i: (0, 0))

    args, in_specs = [], []
    for x in continuous_inputs:
        xp = pad_rows(x)
        args.append(xp)
        in_specs.append(act_spec(xp.shape[1]))
    for c in cats:                       # unpadded [N, D] — no wrapper lane padding
        cp = pad_rows(c)
        args.append(cp)
        in_specs.append(act_spec(d))

    param_list = []
    for br in branches:
        param_list += [br["w1"], br["b1"], br["g"], br["be"]]
    param_list += [prepared["w2_all"], prepared["b2_sum"],
                   prepared["g0"], prepared["be0"], prepared["w"], prepared["b"],
                   prepared["g1"], prepared["be1"]]
    for t in param_list:
        args.append(t)
        in_specs.append(par_spec(t.shape))

    param_bytes = sum(int(t.size) * 4 for t in param_list)
    in_cols = [x.shape[1] for x in continuous_inputs]
    vmem_limit = _vmem_limit_bytes(tm, in_cols, d, len(cats), param_bytes)

    flops = 2 * n_pad * (sum(in_cols) * d + (k * d) * d + d * d)
    bytes_accessed = sum(int(a.size) * 4 for a in args) + n_pad * d * 4
    transcendentals = (k + 2) * n_pad    # one rsqrt per row per LayerNorm

    kernel = make_fused_kernel(k, len(cats))
    out = pl.pallas_call(
        kernel,
        out_shape=jax.ShapeDtypeStruct((n_pad, d), jnp.float32),
        grid_spec=pltpu.PrefetchScalarGridSpec(
            num_scalar_prefetch=0,
            grid=grid,
            in_specs=in_specs,
            out_specs=pl.BlockSpec((tm, d), lambda i: (i, 0)),
        ),
        compiler_params=pltpu.CompilerParams(
            dimension_semantics=("parallel",),
            vmem_limit_bytes=vmem_limit,
        ),
        cost_estimate=pl.CostEstimate(
            flops=flops,
            transcendentals=transcendentals,
            bytes_accessed=bytes_accessed,
        ),
    )(*args)

    return out if n_pad == n else out[:n]


# ---------------------------------------------------------------------------
# Pure-JAX reference for correctness checking
# ---------------------------------------------------------------------------
def _layernorm_ref(x, gamma, beta):
    mu = jnp.mean(x, axis=-1, keepdims=True)
    var = jnp.mean((x - mu) ** 2, axis=-1, keepdims=True)
    return (x - mu) * lax.rsqrt(var + EPS) * gamma + beta


def reference_forward(params, continuous_inputs, categorical_inputs=None):
    outs = []
    for x, p in zip(continuous_inputs, params["branches"]):
        h = x @ p["w1"] + p["b1"]
        h = _layernorm_ref(h, p["g"], p["be"])
        h = jnp.maximum(h, 0.0)
        outs.append(h @ p["w2"] + p["b2"])
    s = jnp.stack(outs, 0).sum(0)
    # NOTE: the torch module's print() of this intermediate is debug logging only.
    if categorical_inputs is not None:
        s = s + jnp.stack(categorical_inputs, 0).sum(0)
    a = params["aggr"]
    h = _layernorm_ref(s, a["g0"], a["be0"])
    h = jnp.maximum(h, 0.0)
    h = h @ a["w"] + a["b"]
    return _layernorm_ref(h, a["g1"], a["be1"])


if __name__ == "__main__":
    key = jax.random.PRNGKey(0)

    in_channels = [4, 6]
    out_channel = 32
    n = 8  # number of samples / nodes

    key, kp, kx0, kx1, kc = jax.random.split(key, 5)
    params = init_params(kp, in_channels, out_channel)
    prepared = prepare_params(params)   # one-time weight packing (not per call)

    continuous_inputs = [
        jax.random.normal(kx0, (n, in_channels[0]), jnp.float32),
        jax.random.normal(kx1, (n, in_channels[1]), jnp.float32),
    ]
    categorical_inputs = [jax.random.normal(kc, (n, out_channel), jnp.float32)]

    # With categorical inputs.
    out = multiple_input_embedding(prepared, continuous_inputs, categorical_inputs)
    out = jax.block_until_ready(out)
    ref = reference_forward(params, continuous_inputs, categorical_inputs)
    assert out.shape == (n, out_channel)
    assert jnp.allclose(out, ref, atol=1e-4, rtol=1e-4), "mismatch (with categorical)"

    # Without categorical inputs (exercises the no-cat kernel variant).
    out_nc = multiple_input_embedding(prepared, continuous_inputs, None)
    out_nc = jax.block_until_ready(out_nc)
    ref_nc = reference_forward(params, continuous_inputs, None)
    assert jnp.allclose(out_nc, ref_nc, atol=1e-4, rtol=1e-4), "mismatch (no categorical)"

    print("KERNEL_OK")
</pallas_src>

<mosaic_0001>
module attributes {stable_mosaic.version = 11 : i64} {
  func.func @kernel(%arg0: i32, %arg1: memref<8x4xf32, #tpu.memory_space<vmem>>, %arg2: memref<8x6xf32, #tpu.memory_space<vmem>>, %arg3: memref<8x32xf32, #tpu.memory_space<vmem>>, %arg4: memref<4x32xf32, #tpu.memory_space<vmem>>, %arg5: memref<1x32xf32, #tpu.memory_space<vmem>>, %arg6: memref<1x32xf32, #tpu.memory_space<vmem>>, %arg7: memref<1x32xf32, #tpu.memory_space<vmem>>, %arg8: memref<6x32xf32, #tpu.memory_space<vmem>>, %arg9: memref<1x32xf32, #tpu.memory_space<vmem>>, %arg10: memref<1x32xf32, #tpu.memory_space<vmem>>, %arg11: memref<1x32xf32, #tpu.memory_space<vmem>>, %arg12: memref<64x32xf32, #tpu.memory_space<vmem>>, %arg13: memref<1x32xf32, #tpu.memory_space<vmem>>, %arg14: memref<1x32xf32, #tpu.memory_space<vmem>>, %arg15: memref<1x32xf32, #tpu.memory_space<vmem>>, %arg16: memref<32x32xf32, #tpu.memory_space<vmem>>, %arg17: memref<1x32xf32, #tpu.memory_space<vmem>>, %arg18: memref<1x32xf32, #tpu.memory_space<vmem>>, %arg19: memref<1x32xf32, #tpu.memory_space<vmem>>, %arg20: memref<8x32xf32, #tpu.memory_space<vmem>>) attributes {dimension_semantics = [#tpu.dimension_semantics<parallel>], iteration_bounds = array<i64: 1>, scalar_prefetch = 0 : i64, scratch_operands = 0 : i64, tpu.core_type = #tpu.core_type<tc>, window_params = [{transform_indices = @transform_0, window_bounds = array<i64: 8, 4>}, {transform_indices = @transform_1, window_bounds = array<i64: 8, 6>}, {transform_indices = @transform_2, window_bounds = array<i64: 8, 32>}, {pipeline_mode = #tpu.pipeline_mode<synchronous>, transform_indices = @transform_3, window_bounds = array<i64: 4, 32>}, {pipeline_mode = #tpu.pipeline_mode<synchronous>, transform_indices = @transform_4, window_bounds = array<i64: 1, 32>}, {pipeline_mode = #tpu.pipeline_mode<synchronous>, transform_indices = @transform_5, window_bounds = array<i64: 1, 32>}, {pipeline_mode = #tpu.pipeline_mode<synchronous>, transform_indices = @transform_6, window_bounds = array<i64: 1, 32>}, {pipeline_mode = #tpu.pipeline_mode<synchronous>, transform_indices = @transform_7, window_bounds = array<i64: 6, 32>}, {pipeline_mode = #tpu.pipeline_mode<synchronous>, transform_indices = @transform_8, window_bounds = array<i64: 1, 32>}, {pipeline_mode = #tpu.pipeline_mode<synchronous>, transform_indices = @transform_9, window_bounds = array<i64: 1, 32>}, {pipeline_mode = #tpu.pipeline_mode<synchronous>, transform_indices = @transform_10, window_bounds = array<i64: 1, 32>}, {pipeline_mode = #tpu.pipeline_mode<synchronous>, transform_indices = @transform_11, window_bounds = array<i64: 64, 32>}, {pipeline_mode = #tpu.pipeline_mode<synchronous>, transform_indices = @transform_12, window_bounds = array<i64: 1, 32>}, {pipeline_mode = #tpu.pipeline_mode<synchronous>, transform_indices = @transform_13, window_bounds = array<i64: 1, 32>}, {pipeline_mode = #tpu.pipeline_mode<synchronous>, transform_indices = @transform_14, window_bounds = array<i64: 1, 32>}, {pipeline_mode = #tpu.pipeline_mode<synchronous>, transform_indices = @transform_15, window_bounds = array<i64: 32, 32>}, {pipeline_mode = #tpu.pipeline_mode<synchronous>, transform_indices = @transform_16, window_bounds = array<i64: 1, 32>}, {pipeline_mode = #tpu.pipeline_mode<synchronous>, transform_indices = @transform_17, window_bounds = array<i64: 1, 32>}, {pipeline_mode = #tpu.pipeline_mode<synchronous>, transform_indices = @transform_18, window_bounds = array<i64: 1, 32>}, {transform_indices = @transform_19, window_bounds = array<i64: 8, 32>}]} {
    %c0 = arith.constant 0 : index
    %c0_0 = arith.constant 0 : index
    %0 = vector.load %arg4[%c0, %c0_0] : memref<4x32xf32, #tpu.memory_space<vmem>>, vector<4x32xf32>
    %c0_1 = arith.constant 0 : index
    %c0_2 = arith.constant 0 : index
    %1 = vector.load %arg5[%c0_1, %c0_2] : memref<1x32xf32, #tpu.memory_space<vmem>>, vector<1x32xf32>
    %c0_3 = arith.constant 0 : index
    %c0_4 = arith.constant 0 : index
    %2 = vector.load %arg6[%c0_3, %c0_4] : memref<1x32xf32, #tpu.memory_space<vmem>>, vector<1x32xf32>
    %c0_5 = arith.constant 0 : index
    %c0_6 = arith.constant 0 : index
    %3 = vector.load %arg7[%c0_5, %c0_6] : memref<1x32xf32, #tpu.memory_space<vmem>>, vector<1x32xf32>
    %c0_7 = arith.constant 0 : index
    %c0_8 = arith.constant 0 : index
    %4 = vector.load %arg1[%c0_7, %c0_8] : memref<8x4xf32, #tpu.memory_space<vmem>>, vector<8x4xf32>
    %cst = arith.constant dense<0.000000e+00> : vector<8x32xf32>
    %5 = tpu.matmul %4, %0, %cst {dimension_numbers = #tpu.dot_dimension_numbers<[1], [0], [0], [1], [0, 0, 1, 1], [], []>} : vector<8x4xf32>, vector<4x32xf32>, vector<8x32xf32> -> vector<8x32xf32>
    %6 = vector.broadcast %1 : vector<1x32xf32> to vector<8x32xf32>
    %7 = arith.addf %5, %6 : vector<8x32xf32>
    %cst_9 = arith.constant dense<0.000000e+00> : vector<8xf32>
    %8 = vector.multi_reduction <add>, %7, %cst_9 [1] : vector<8x32xf32> to vector<8xf32>
    %9 = vector.shape_cast %8 : vector<8xf32> to vector<8x1xf32>
    %cst_10 = arith.constant 3.200000e+01 : f32
    %10 = vector.broadcast %cst_10 : f32 to vector<8x1xf32>
    %11 = arith.divf %9, %10 : vector<8x1xf32>
    %12 = vector.broadcast %11 : vector<8x1xf32> to vector<8x32xf32>
    %13 = arith.subf %7, %12 : vector<8x32xf32>
    %14 = arith.mulf %13, %13 : vector<8x32xf32>
    %cst_11 = arith.constant dense<0.000000e+00> : vector<8xf32>
    %15 = vector.multi_reduction <add>, %14, %cst_11 [1] : vector<8x32xf32> to vector<8xf32>
    %16 = vector.shape_cast %15 : vector<8xf32> to vector<8x1xf32>
    %cst_12 = arith.constant 3.200000e+01 : f32
    %17 = vector.broadcast %cst_12 : f32 to vector<8x1xf32>
    %18 = arith.divf %16, %17 : vector<8x1xf32>
    %cst_13 = arith.constant 9.99999974E-6 : f32
    %19 = vector.broadcast %cst_13 : f32 to vector<8x1xf32>
    %20 = arith.addf %18, %19 : vector<8x1xf32>
    %21 = math.rsqrt %20 : vector<8x1xf32>
    %22 = vector.broadcast %21 : vector<8x1xf32> to vector<8x32xf32>
    %23 = arith.mulf %13, %22 : vector<8x32xf32>
    %24 = vector.broadcast %2 : vector<1x32xf32> to vector<8x32xf32>
    %25 = arith.mulf %23, %24 : vector<8x32xf32>
    %26 = vector.broadcast %3 : vector<1x32xf32> to vector<8x32xf32>
    %27 = arith.addf %25, %26 : vector<8x32xf32>
    %cst_14 = arith.constant 0.000000e+00 : f32
    %28 = vector.broadcast %cst_14 : f32 to vector<8x32xf32>
    %29 = arith.maximumf %27, %28 : vector<8x32xf32>
    %c0_15 = arith.constant 0 : index
    %c0_16 = arith.constant 0 : index
    %30 = vector.load %arg8[%c0_15, %c0_16] : memref<6x32xf32, #tpu.memory_space<vmem>>, vector<6x32xf32>
    %c0_17 = arith.constant 0 : index
    %c0_18 = arith.constant 0 : index
    %31 = vector.load %arg9[%c0_17, %c0_18] : memref<1x32xf32, #tpu.memory_space<vmem>>, vector<1x32xf32>
    %c0_19 = arith.constant 0 : index
    %c0_20 = arith.constant 0 : index
    %32 = vector.load %arg10[%c0_19, %c0_20] : memref<1x32xf32, #tpu.memory_space<vmem>>, vector<1x32xf32>
    %c0_21 = arith.constant 0 : index
    %c0_22 = arith.constant 0 : index
    %33 = vector.load %arg11[%c0_21, %c0_22] : memref<1x32xf32, #tpu.memory_space<vmem>>, vector<1x32xf32>
    %c0_23 = arith.constant 0 : index
    %c0_24 = arith.constant 0 : index
    %34 = vector.load %arg2[%c0_23, %c0_24] : memref<8x6xf32, #tpu.memory_space<vmem>>, vector<8x6xf32>
    %cst_25 = arith.constant dense<0.000000e+00> : vector<8x32xf32>
    %35 = tpu.matmul %34, %30, %cst_25 {dimension_numbers = #tpu.dot_dimension_numbers<[1], [0], [0], [1], [0, 0, 1, 1], [], []>} : vector<8x6xf32>, vector<6x32xf32>, vector<8x32xf32> -> vector<8x32xf32>
    %36 = vector.broadcast %31 : vector<1x32xf32> to vector<8x32xf32>
    %37 = arith.addf %35, %36 : vector<8x32xf32>
    %cst_26 = arith.constant dense<0.000000e+00> : vector<8xf32>
    %38 = vector.multi_reduction <add>, %37, %cst_26 [1] : vector<8x32xf32> to vector<8xf32>
    %39 = vector.shape_cast %38 : vector<8xf32> to vector<8x1xf32>
    %cst_27 = arith.constant 3.200000e+01 : f32
    %40 = vector.broadcast %cst_27 : f32 to vector<8x1xf32>
    %41 = arith.divf %39, %40 : vector<8x1xf32>
    %42 = vector.broadcast %41 : vector<8x1xf32> to vector<8x32xf32>
    %43 = arith.subf %37, %42 : vector<8x32xf32>
    %44 = arith.mulf %43, %43 : vector<8x32xf32>
    %cst_28 = arith.constant dense<0.000000e+00> : vector<8xf32>
    %45 = vector.multi_reduction <add>, %44, %cst_28 [1] : vector<8x32xf32> to vector<8xf32>
    %46 = vector.shape_cast %45 : vector<8xf32> to vector<8x1xf32>
    %cst_29 = arith.constant 3.200000e+01 : f32
    %47 = vector.broadcast %cst_29 : f32 to vector<8x1xf32>
    %48 = arith.divf %46, %47 : vector<8x1xf32>
    %cst_30 = arith.constant 9.99999974E-6 : f32
    %49 = vector.broadcast %cst_30 : f32 to vector<8x1xf32>
    %50 = arith.addf %48, %49 : vector<8x1xf32>
    %51 = math.rsqrt %50 : vector<8x1xf32>
    %52 = vector.broadcast %51 : vector<8x1xf32> to vector<8x32xf32>
    %53 = arith.mulf %43, %52 : vector<8x32xf32>
    %54 = vector.broadcast %32 : vector<1x32xf32> to vector<8x32xf32>
    %55 = arith.mulf %53, %54 : vector<8x32xf32>
    %56 = vector.broadcast %33 : vector<1x32xf32> to vector<8x32xf32>
    %57 = arith.addf %55, %56 : vector<8x32xf32>
    %cst_31 = arith.constant 0.000000e+00 : f32
    %58 = vector.broadcast %cst_31 : f32 to vector<8x32xf32>
    %59 = arith.maximumf %57, %58 : vector<8x32xf32>
    %c0_32 = arith.constant 0 : index
    %c0_33 = arith.constant 0 : index
    %60 = vector.load %arg12[%c0_32, %c0_33] : memref<64x32xf32, #tpu.memory_space<vmem>>, vector<64x32xf32>
    %c0_34 = arith.constant 0 : index
    %c0_35 = arith.constant 0 : index
    %61 = vector.load %arg13[%c0_34, %c0_35] : memref<1x32xf32, #tpu.memory_space<vmem>>, vector<1x32xf32>
    %62 = tpu.concatenate %29, %59 in 1 : vector<8x32xf32>, vector<8x32xf32> -> vector<8x64xf32>
    %cst_36 = arith.constant dense<0.000000e+00> : vector<8x32xf32>
    %63 = tpu.matmul %62, %60, %cst_36 {dimension_numbers = #tpu.dot_dimension_numbers<[1], [0], [0], [1], [0, 0, 1, 1], [], []>} : vector<8x64xf32>, vector<64x32xf32>, vector<8x32xf32> -> vector<8x32xf32>
    %64 = vector.broadcast %61 : vector<1x32xf32> to vector<8x32xf32>
    %65 = arith.addf %63, %64 : vector<8x32xf32>
    %c0_37 = arith.constant 0 : index
    %c0_38 = arith.constant 0 : index
    %66 = vector.load %arg3[%c0_37, %c0_38] : memref<8x32xf32, #tpu.memory_space<vmem>>, vector<8x32xf32>
    %67 = arith.addf %65, %66 : vector<8x32xf32>
    %c0_39 = arith.constant 0 : index
    %c0_40 = arith.constant 0 : index
    %68 = vector.load %arg14[%c0_39, %c0_40] : memref<1x32xf32, #tpu.memory_space<vmem>>, vector<1x32xf32>
    %c0_41 = arith.constant 0 : index
    %c0_42 = arith.constant 0 : index
    %69 = vector.load %arg15[%c0_41, %c0_42] : memref<1x32xf32, #tpu.memory_space<vmem>>, vector<1x32xf32>
    %c0_43 = arith.constant 0 : index
    %c0_44 = arith.constant 0 : index
    %70 = vector.load %arg16[%c0_43, %c0_44] : memref<32x32xf32, #tpu.memory_space<vmem>>, vector<32x32xf32>
    %c0_45 = arith.constant 0 : index
    %c0_46 = arith.constant 0 : index
    %71 = vector.load %arg17[%c0_45, %c0_46] : memref<1x32xf32, #tpu.memory_space<vmem>>, vector<1x32xf32>
    %c0_47 = arith.constant 0 : index
    %c0_48 = arith.constant 0 : index
    %72 = vector.load %arg18[%c0_47, %c0_48] : memref<1x32xf32, #tpu.memory_space<vmem>>, vector<1x32xf32>
    %c0_49 = arith.constant 0 : index
    %c0_50 = arith.constant 0 : index
    %73 = vector.load %arg19[%c0_49, %c0_50] : memref<1x32xf32, #tpu.memory_space<vmem>>, vector<1x32xf32>
    %cst_51 = arith.constant dense<0.000000e+00> : vector<8xf32>
    %74 = vector.multi_reduction <add>, %67, %cst_51 [1] : vector<8x32xf32> to vector<8xf32>
    %75 = vector.shape_cast %74 : vector<8xf32> to vector<8x1xf32>
    %cst_52 = arith.constant 3.200000e+01 : f32
    %76 = vector.broadcast %cst_52 : f32 to vector<8x1xf32>
    %77 = arith.divf %75, %76 : vector<8x1xf32>
    %78 = vector.broadcast %77 : vector<8x1xf32> to vector<8x32xf32>
    %79 = arith.subf %67, %78 : vector<8x32xf32>
    %80 = arith.mulf %79, %79 : vector<8x32xf32>
    %cst_53 = arith.constant dense<0.000000e+00> : vector<8xf32>
    %81 = vector.multi_reduction <add>, %80, %cst_53 [1] : vector<8x32xf32> to vector<8xf32>
    %82 = vector.shape_cast %81 : vector<8xf32> to vector<8x1xf32>
    %cst_54 = arith.constant 3.200000e+01 : f32
    %83 = vector.broadcast %cst_54 : f32 to vector<8x1xf32>
    %84 = arith.divf %82, %83 : vector<8x1xf32>
    %cst_55 = arith.constant 9.99999974E-6 : f32
    %85 = vector.broadcast %cst_55 : f32 to vector<8x1xf32>
    %86 = arith.addf %84, %85 : vector<8x1xf32>
    %87 = math.rsqrt %86 : vector<8x1xf32>
    %88 = vector.broadcast %87 : vector<8x1xf32> to vector<8x32xf32>
    %89 = arith.mulf %79, %88 : vector<8x32xf32>
    %90 = vector.broadcast %68 : vector<1x32xf32> to vector<8x32xf32>
    %91 = arith.mulf %89, %90 : vector<8x32xf32>
    %92 = vector.broadcast %69 : vector<1x32xf32> to vector<8x32xf32>
    %93 = arith.addf %91, %92 : vector<8x32xf32>
    %cst_56 = arith.constant 0.000000e+00 : f32
    %94 = vector.broadcast %cst_56 : f32 to vector<8x32xf32>
    %95 = arith.maximumf %93, %94 : vector<8x32xf32>
    %cst_57 = arith.constant dense<0.000000e+00> : vector<8x32xf32>
    %96 = tpu.matmul %95, %70, %cst_57 {dimension_numbers = #tpu.dot_dimension_numbers<[1], [0], [0], [1], [0, 0, 1, 1], [], []>} : vector<8x32xf32>, vector<32x32xf32>, vector<8x32xf32> -> vector<8x32xf32>
    %97 = vector.broadcast %71 : vector<1x32xf32> to vector<8x32xf32>
    %98 = arith.addf %96, %97 : vector<8x32xf32>
    %cst_58 = arith.constant dense<0.000000e+00> : vector<8xf32>
    %99 = vector.multi_reduction <add>, %98, %cst_58 [1] : vector<8x32xf32> to vector<8xf32>
    %100 = vector.shape_cast %99 : vector<8xf32> to vector<8x1xf32>
    %cst_59 = arith.constant 3.200000e+01 : f32
    %101 = vector.broadcast %cst_59 : f32 to vector<8x1xf32>
    %102 = arith.divf %100, %101 : vector<8x1xf32>
    %103 = vector.broadcast %102 : vector<8x1xf32> to vector<8x32xf32>
    %104 = arith.subf %98, %103 : vector<8x32xf32>
    %105 = arith.mulf %104, %104 : vector<8x32xf32>
    %cst_60 = arith.constant dense<0.000000e+00> : vector<8xf32>
    %106 = vector.multi_reduction <add>, %105, %cst_60 [1] : vector<8x32xf32> to vector<8xf32>
    %107 = vector.shape_cast %106 : vector<8xf32> to vector<8x1xf32>
    %cst_61 = arith.constant 3.200000e+01 : f32
    %108 = vector.broadcast %cst_61 : f32 to vector<8x1xf32>
    %109 = arith.divf %107, %108 : vector<8x1xf32>
    %cst_62 = arith.constant 9.99999974E-6 : f32
    %110 = vector.broadcast %cst_62 : f32 to vector<8x1xf32>
    %111 = arith.addf %109, %110 : vector<8x1xf32>
    %112 = math.rsqrt %111 : vector<8x1xf32>
    %113 = vector.broadcast %112 : vector<8x1xf32> to vector<8x32xf32>
    %114 = arith.mulf %104, %113 : vector<8x32xf32>
    %115 = vector.broadcast %72 : vector<1x32xf32> to vector<8x32xf32>
    %116 = arith.mulf %114, %115 : vector<8x32xf32>
    %117 = vector.broadcast %73 : vector<1x32xf32> to vector<8x32xf32>
    %118 = arith.addf %116, %117 : vector<8x32xf32>
    %c0_63 = arith.constant 0 : index
    %c0_64 = arith.constant 0 : index
    %119 = vector.load %arg20[%c0_63, %c0_64] : memref<8x32xf32, #tpu.memory_space<vmem>>, vector<8x32xf32>
    tpu.vector_store %arg20[%c0_63, %c0_64], %118 {strides = array<i32>} : memref<8x32xf32, #tpu.memory_space<vmem>>, vector<8x32xf32>,
    return
  }
  func.func @transform_0(%arg0: i32) -> (i32, i32) {
    %c0_i32 = arith.constant 0 : i32
    %c0_i32_0 = arith.constant 0 : i32
    return %arg0, %c0_i32 : i32, i32
  }
  func.func @transform_1(%arg0: i32) -> (i32, i32) {
    %c0_i32 = arith.constant 0 : i32
    %c0_i32_0 = arith.constant 0 : i32
    return %arg0, %c0_i32 : i32, i32
  }
  func.func @transform_2(%arg0: i32) -> (i32, i32) {
    %c0_i32 = arith.constant 0 : i32
    %c0_i32_0 = arith.constant 0 : i32
    return %arg0, %c0_i32 : i32, i32
  }
  func.func @transform_3(%arg0: i32) -> (i32, i32) {
    %c0_i32 = arith.constant 0 : i32
    %c0_i32_0 = arith.constant 0 : i32
    %c0_i32_1 = arith.constant 0 : i32
    return %c0_i32, %c0_i32_0 : i32, i32
  }
  func.func @transform_4(%arg0: i32) -> (i32, i32) {
    %c0_i32 = arith.constant 0 : i32
    %c0_i32_0 = arith.constant 0 : i32
    %c0_i32_1 = arith.constant 0 : i32
    return %c0_i32, %c0_i32_0 : i32, i32
  }
  func.func @transform_5(%arg0: i32) -> (i32, i32) {
    %c0_i32 = arith.constant 0 : i32
    %c0_i32_0 = arith.constant 0 : i32
    %c0_i32_1 = arith.constant 0 : i32
    return %c0_i32, %c0_i32_0 : i32, i32
  }
  func.func @transform_6(%arg0: i32) -> (i32, i32) {
    %c0_i32 = arith.constant 0 : i32
    %c0_i32_0 = arith.constant 0 : i32
    %c0_i32_1 = arith.constant 0 : i32
    return %c0_i32, %c0_i32_0 : i32, i32
  }
  func.func @transform_7(%arg0: i32) -> (i32, i32) {
    %c0_i32 = arith.constant 0 : i32
    %c0_i32_0 = arith.constant 0 : i32
    %c0_i32_1 = arith.constant 0 : i32
    return %c0_i32, %c0_i32_0 : i32, i32
  }
  func.func @transform_8(%arg0: i32) -> (i32, i32) {
    %c0_i32 = arith.constant 0 : i32
    %c0_i32_0 = arith.constant 0 : i32
    %c0_i32_1 = arith.constant 0 : i32
    return %c0_i32, %c0_i32_0 : i32, i32
  }
  func.func @transform_9(%arg0: i32) -> (i32, i32) {
    %c0_i32 = arith.constant 0 : i32
    %c0_i32_0 = arith.constant 0 : i32
    %c0_i32_1 = arith.constant 0 : i32
    return %c0_i32, %c0_i32_0 : i32, i32
  }
  func.func @transform_10(%arg0: i32) -> (i32, i32) {
    %c0_i32 = arith.constant 0 : i32
    %c0_i32_0 = arith.constant 0 : i32
    %c0_i32_1 = arith.constant 0 : i32
    return %c0_i32, %c0_i32_0 : i32, i32
  }
  func.func @transform_11(%arg0: i32) -> (i32, i32) {
    %c0_i32 = arith.constant 0 : i32
    %c0_i32_0 = arith.constant 0 : i32
    %c0_i32_1 = arith.constant 0 : i32
    return %c0_i32, %c0_i32_0 : i32, i32
  }
  func.func @transform_12(%arg0: i32) -> (i32, i32) {
    %c0_i32 = arith.constant 0 : i32
    %c0_i32_0 = arith.constant 0 : i32
    %c0_i32_1 = arith.constant 0 : i32
    return %c0_i32, %c0_i32_0 : i32, i32
  }
  func.func @transform_13(%arg0: i32) -> (i32, i32) {
    %c0_i32 = arith.constant 0 : i32
    %c0_i32_0 = arith.constant 0 : i32
    %c0_i32_1 = arith.constant 0 : i32
    return %c0_i32, %c0_i32_0 : i32, i32
  }
  func.func @transform_14(%arg0: i32) -> (i32, i32) {
    %c0_i32 = arith.constant 0 : i32
    %c0_i32_0 = arith.constant 0 : i32
    %c0_i32_1 = arith.constant 0 : i32
    return %c0_i32, %c0_i32_0 : i32, i32
  }
  func.func @transform_15(%arg0: i32) -> (i32, i32) {
    %c0_i32 = arith.constant 0 : i32
    %c0_i32_0 = arith.constant 0 : i32
    %c0_i32_1 = arith.constant 0 : i32
    return %c0_i32, %c0_i32_0 : i32, i32
  }
  func.func @transform_16(%arg0: i32) -> (i32, i32) {
    %c0_i32 = arith.constant 0 : i32
    %c0_i32_0 = arith.constant 0 : i32
    %c0_i32_1 = arith.constant 0 : i32
    return %c0_i32, %c0_i32_0 : i32, i32
  }
  func.func @transform_17(%arg0: i32) -> (i32, i32) {
    %c0_i32 = arith.constant 0 : i32
    %c0_i32_0 = arith.constant 0 : i32
    %c0_i32_1 = arith.constant 0 : i32
    return %c0_i32, %c0_i32_0 : i32, i32
  }
  func.func @transform_18(%arg0: i32) -> (i32, i32) {
    %c0_i32 = arith.constant 0 : i32
    %c0_i32_0 = arith.constant 0 : i32
    %c0_i32_1 = arith.constant 0 : i32
    return %c0_i32, %c0_i32_0 : i32, i32
  }
  func.func @transform_19(%arg0: i32) -> (i32, i32) {
    %c0_i32 = arith.constant 0 : i32
    %c0_i32_0 = arith.constant 0 : i32
    return %arg0, %c0_i32 : i32, i32
  }
}

</mosaic_0001>

<llo_original>
// kernel: tpu_custom_call.1
$region0: #{tpu_custom_call.1}
  #allocation0 [shape = 'u32[]', space=smem, size = 0x4, offset = 0x4, fixed_abs, tag = 'smem constant byte address 0x4 - core index']
  #allocation1 [shape = 'u32[144,128]{1,0:T(1,128)}', space=vmem, size = 0x12000, scoped, tag = 'internal scratch']
  %s0 = inlined_call_operand.vmem [shape: f32[8,4], index: 0, kind: input, shape index: {}]
  %s1 = inlined_call_operand.vmem [shape: f32[8,6], index: 1, kind: input, shape index: {}]
  %s2 = inlined_call_operand.vmem [shape: f32[8,32], index: 2, kind: input, shape index: {}]
  %s3 = inlined_call_operand.vmem [shape: f32[4,32], index: 3, kind: input, shape index: {}]
  %s4 = inlined_call_operand.vmem [shape: f32[1,32], index: 4, kind: input, shape index: {}]
  %s5 = inlined_call_operand.vmem [shape: f32[1,32], index: 5, kind: input, shape index: {}]
  %s6 = inlined_call_operand.vmem [shape: f32[1,32], index: 6, kind: input, shape index: {}]
  %s7 = inlined_call_operand.vmem [shape: f32[6,32], index: 7, kind: input, shape index: {}]
  %s8 = inlined_call_operand.vmem [shape: f32[1,32], index: 8, kind: input, shape index: {}]
  %s9 = inlined_call_operand.vmem [shape: f32[1,32], index: 9, kind: input, shape index: {}]
  %s10 = inlined_call_operand.vmem [shape: f32[1,32], index: 10, kind: input, shape index: {}]
  %s11 = inlined_call_operand.vmem [shape: f32[64,32], index: 11, kind: input, shape index: {}]
  %s12 = inlined_call_operand.vmem [shape: f32[1,32], index: 12, kind: input, shape index: {}]
  %s13 = inlined_call_operand.vmem [shape: f32[1,32], index: 13, kind: input, shape index: {}]
  %s14 = inlined_call_operand.vmem [shape: f32[1,32], index: 14, kind: input, shape index: {}]
  %s15 = inlined_call_operand.vmem [shape: f32[32,32], index: 15, kind: input, shape index: {}]
  %s16 = inlined_call_operand.vmem [shape: f32[1,32], index: 16, kind: input, shape index: {}]
  %s17 = inlined_call_operand.vmem [shape: f32[1,32], index: 17, kind: input, shape index: {}]
  %s18 = inlined_call_operand.vmem [shape: f32[1,32], index: 18, kind: input, shape index: {}]
  %s19 = inlined_call_operand.hbm [shape: f32[8,32], index: 19, kind: output, shape index: {}]
  %s20 = sld [smem:[#allocation0]]
  $region86: #{tpu_custom_call.1} parent=0
    _
  %s22 = ssub.s32 1, %s20
  %s23 = scalar_select 0, %s22, %s20
  $region1: #{tpu_custom_call.1} parent=0
    #allocation2 [shape = 'u8[4096]{0}', space=vmem, size = 0x1000, scoped, tag = 'output window, operand 0, single buffered']
    #allocation3 [shape = 's32[1]{0}', space=sflag, size = 0x4, scoped, tag = 'scoped memory for tpu_custom_call.1']
    %24 = vsyncpa [#allocation3], 0
    // Predicated region
    $region2: #{tpu_custom_call.1} parent=1 // pred_check
      _
    $region3: #{tpu_custom_call.1} parent=1 // pred_check_branch
      %26 = sbr.rel (0) target = $region5
    $region4: #{tpu_custom_call.1} parent=1 // pred_region
      _
    $region5: #{tpu_custom_call.1} parent=1 // pred_fallthru
      _
    // Predicated region
    $region6: #{tpu_custom_call.1} parent=1 // pred_check
      _
    $region7: #{tpu_custom_call.1} parent=1 // pred_check_branch
      %28 = sbr.rel (0) target = $region9
    $region8: #{tpu_custom_call.1} parent=1 // pred_region
      _
    $region9: #{tpu_custom_call.1} parent=1 // pred_fallthru
      _
    // Predicated region
    $region10: #{tpu_custom_call.1} parent=1 // pred_check
      _
    $region11: #{tpu_custom_call.1} parent=1 // pred_check_branch
      %30 = sbr.rel (0) target = $region13
    $region12: #{tpu_custom_call.1} parent=1 // pred_region
      _
    $region13: #{tpu_custom_call.1} parent=1 // pred_fallthru
      _
    // Predicated region
    $region14: #{tpu_custom_call.1} parent=1 // pred_check
      _
    $region15: #{tpu_custom_call.1} parent=1 // pred_check_branch
      %32 = sbr.rel (0) target = $region17
    $region16: #{tpu_custom_call.1} parent=1 // pred_region
      _
    $region17: #{tpu_custom_call.1} parent=1 // pred_fallthru
      _
    // Predicated region
    $region18: #{tpu_custom_call.1} parent=1 // pred_check
      _
    $region19: #{tpu_custom_call.1} parent=1 // pred_check_branch
      %34 = sbr.rel (0) target = $region21
    $region20: #{tpu_custom_call.1} parent=1 // pred_region
      _
    $region21: #{tpu_custom_call.1} parent=1 // pred_fallthru
      _
    // Predicated region
    $region22: #{tpu_custom_call.1} parent=1 // pred_check
      _
    $region23: #{tpu_custom_call.1} parent=1 // pred_check_branch
      %36 = sbr.rel (0) target = $region25
    $region24: #{tpu_custom_call.1} parent=1 // pred_region
      _
    $region25: #{tpu_custom_call.1} parent=1 // pred_fallthru
      _
    // Predicated region
    $region26: #{tpu_custom_call.1} parent=1 // pred_check
      _
    $region27: #{tpu_custom_call.1} parent=1 // pred_check_branch
      %38 = sbr.rel (0) target = $region29
    $region28: #{tpu_custom_call.1} parent=1 // pred_region
      _
    $region29: #{tpu_custom_call.1} parent=1 // pred_fallthru
      _
    // Predicated region
    $region30: #{tpu_custom_call.1} parent=1 // pred_check
      _
    $region31: #{tpu_custom_call.1} parent=1 // pred_check_branch
      %40 = sbr.rel (0) target = $region33
    $region32: #{tpu_custom_call.1} parent=1 // pred_region
      _
    $region33: #{tpu_custom_call.1} parent=1 // pred_fallthru
      _
    // Predicated region
    $region34: #{tpu_custom_call.1} parent=1 // pred_check
      _
    $region35: #{tpu_custom_call.1} parent=1 // pred_check_branch
      %42 = sbr.rel (0) target = $region37
    $region36: #{tpu_custom_call.1} parent=1 // pred_region
      _
    $region37: #{tpu_custom_call.1} parent=1 // pred_fallthru
      _
    // Predicated region
    $region38: #{tpu_custom_call.1} parent=1 // pred_check
      _
    $region39: #{tpu_custom_call.1} parent=1 // pred_check_branch
      %44 = sbr.rel (0) target = $region41
    $region40: #{tpu_custom_call.1} parent=1 // pred_region
      _
    $region41: #{tpu_custom_call.1} parent=1 // pred_fallthru
      _
    // Predicated region
    $region42: #{tpu_custom_call.1} parent=1 // pred_check
      _
    $region43: #{tpu_custom_call.1} parent=1 // pred_check_branch
      %46 = sbr.rel (0) target = $region45
    $region44: #{tpu_custom_call.1} parent=1 // pred_region
      _
    $region45: #{tpu_custom_call.1} parent=1 // pred_fallthru
      _
    // Predicated region
    $region46: #{tpu_custom_call.1} parent=1 // pred_check
      _
    $region47: #{tpu_custom_call.1} parent=1 // pred_check_branch
      %48 = sbr.rel (0) target = $region49
    $region48: #{tpu_custom_call.1} parent=1 // pred_region
      _
    $region49: #{tpu_custom_call.1} parent=1 // pred_fallthru
      _
    // Predicated region
    $region50: #{tpu_custom_call.1} parent=1 // pred_check
      _
    $region51: #{tpu_custom_call.1} parent=1 // pred_check_branch
      %50 = sbr.rel (0) target = $region53
    $region52: #{tpu_custom_call.1} parent=1 // pred_region
      _
    $region53: #{tpu_custom_call.1} parent=1 // pred_fallthru
      _
    // Predicated region
    $region54: #{tpu_custom_call.1} parent=1 // pred_check
      _
    $region55: #{tpu_custom_call.1} parent=1 // pred_check_branch
      %52 = sbr.rel (0) target = $region57
    $region56: #{tpu_custom_call.1} parent=1 // pred_region
      _
    $region57: #{tpu_custom_call.1} parent=1 // pred_fallthru
      _
    // Predicated region
    $region58: #{tpu_custom_call.1} parent=1 // pred_check
      _
    $region59: #{tpu_custom_call.1} parent=1 // pred_check_branch
      %54 = sbr.rel (0) target = $region61
    $region60: #{tpu_custom_call.1} parent=1 // pred_region
      _
    $region61: #{tpu_custom_call.1} parent=1 // pred_fallthru
      _
    // Predicated region
    $region62: #{tpu_custom_call.1} parent=1 // pred_check
      _
    $region63: #{tpu_custom_call.1} parent=1 // pred_check_branch
      %56 = sbr.rel (0) target = $region65
    $region64: #{tpu_custom_call.1} parent=1 // pred_region
      _
    $region65: #{tpu_custom_call.1} parent=1 // pred_fallthru
      _
    // Predicated region
    $region66: #{tpu_custom_call.1} parent=1 // pred_check
      _
    $region67: #{tpu_custom_call.1} parent=1 // pred_check_branch
      %58 = sbr.rel (0) target = $region69
    $region68: #{tpu_custom_call.1} parent=1 // pred_region
      _
    $region69: #{tpu_custom_call.1} parent=1 // pred_fallthru
      _
    // Predicated region
    $region70: #{tpu_custom_call.1} parent=1 // pred_check
      _
    $region71: #{tpu_custom_call.1} parent=1 // pred_check_branch
      %60 = sbr.rel (0) target = $region73
    $region72: #{tpu_custom_call.1} parent=1 // pred_region
      _
    $region73: #{tpu_custom_call.1} parent=1 // pred_fallthru
      _
    // Predicated region
    $region74: #{tpu_custom_call.1} parent=1 // pred_check
      _
    $region75: #{tpu_custom_call.1} parent=1 // pred_check_branch
      %62 = sbr.rel (0) target = $region77
    $region76: #{tpu_custom_call.1} parent=1 // pred_region
      _
    $region77: #{tpu_custom_call.1} parent=1 // pred_fallthru
      _
    %v63 = vld [vmem:[%s3] sm:$0xf]
    %v64 = vld [vmem:[%s4] sm:$0x1]
    %v65 = vld [vmem:[%s5] sm:$0x1]
    %v66 = vld [vmem:[%s6] sm:$0x1]
    %v67 = vld [vmem:[%s0] sm:$0xff]
    %v69 = vlaneseq
    %v70 = vshrl.u32 %v69, 7
    %v71 = vsub.s32 0, %v70
    %v72 = vrot.slane %v64, %v71
    %vm74 = vcmask 31744
    %v76 = vsel %vm74, %v67, 0
    %vm78 = vcmask 1043456
    %v80 = vsel %vm78, %v63, 0
    %82 = vmatprep.subr.mxu0 0.0
    %83 = vmatpush1.msra.mxu0 %v80
    %84 = vmatprep.subr.mxu0 0.0
    %85 = vmatpush1.msra.mxu0 0.0
    %86 = vmatprep.subr.mxu0 0.0
    %87 = vmatpush1.msra.mxu0 0.0
    %88 = vmatprep.subr.mxu0 0.0
    %89 = vmatpush1.msra.mxu0 0.0
    %90 = vmatprep.subr.mxu0 0.0
    %91 = vmatpush1.msra.mxu0 0.0
    %92 = vmatprep.subr.mxu0 0.0
    %93 = vmatpush1.msra.mxu0 0.0
    %94 = vmatprep.subr.mxu0 0.0
    %95 = vmatpush1.msra.mxu0 0.0
    %96 = vmatprep.subr.mxu0 0.0
    %97 = vmatpush1.msra.mxu0 0.0
    %98 = vmatprep.subr.mxu0 0.0
    %99 = vmatpush1.msra.mxu0 0.0
    %100 = vmatprep.subr.mxu0 0.0
    %101 = vmatpush1.msra.mxu0 0.0
    %102 = vmatprep.subr.mxu0 0.0
    %103 = vmatpush1.msra.mxu0 0.0
    %104 = vmatprep.subr.mxu0 0.0
    %105 = vmatpush1.msra.mxu0 0.0
    %106 = vmatprep.subr.mxu0 0.0
    %107 = vmatpush1.msra.mxu0 0.0
    %108 = vmatprep.subr.mxu0 0.0
    %109 = vmatpush1.msra.mxu0 0.0
    %110 = vmatprep.subr.mxu0 0.0
    %111 = vmatpush1.msra.mxu0 0.0
    %112 = vmatprep.subr.mxu0 0.0
    %113 = vmatpush1.msra.mxu0 0.0
    %114 = vmatprep.subr.mxu0 0.0
    %115 = vmatpush1.msra.mxu0 0.0
    %116 = vmatprep.subr.mxu0 0.0
    %117 = vmatpush1.msra.mxu0 0.0
    %118 = vmatprep.subr.mxu0 0.0
    %119 = vmatpush1.msra.mxu0 0.0
    %120 = vmatprep.subr.mxu0 0.0
    %121 = vmatpush1.msra.mxu0 0.0
    %122 = vmatprep.subr.mxu0 0.0
    %123 = vmatpush1.msra.mxu0 0.0
    %124 = vmatprep.subr.mxu0 0.0
    %125 = vmatpush1.msra.mxu0 0.0
    %126 = vmatprep.subr.mxu0 0.0
    %127 = vmatpush1.msra.mxu0 0.0
    %128 = vmatprep.subr.mxu0 0.0
    %129 = vmatpush1.msra.mxu0 0.0
    %130 = vmatprep.subr.mxu0 0.0
    %131 = vmatpush1.msra.mxu0 0.0
    %132 = vmatprep.subr.mxu0 0.0
    %133 = vmatpush1.msra.mxu0 0.0
    %134 = vmatprep.subr.mxu0 0.0
    %135 = vmatpush1.msra.mxu0 0.0
    %136 = vmatprep.subr.mxu0 0.0
    %137 = vmatpush1.msra.mxu0 0.0
    %138 = vmatprep.subr.mxu0 0.0
    %139 = vmatpush1.msra.mxu0 0.0
    %140 = vmatprep.subr.mxu0 0.0
    %141 = vmatpush1.msra.mxu0 0.0
    %142 = vmatprep.subr.mxu0 0.0
    %143 = vmatpush1.msra.mxu0 0.0
    %144 = vmatprep.subr.mxu0 0.0
    %145 = vmatpush1.msra.mxu0 0.0
    %146 = vmatprep.mubr.f32.mxu0 0.0
    %147 = vmatmul.mubr.f32.gmra.mrb[0].mxu0 %v76
    %v148 = vpop.f32.mrb[0].mxu0
    %v149 = vadd.f32 %v72, %v148
    %v150 = vpop.f32.mrb[0].mxu0
    %151 = vdwg.mxu0
    %vm152 = vcmask 261120
    %v153 = vsel %vm152, %v149, 0.0
    %154 = vadd.xlane.f32.xlu0 %v153
    %v155 = vpop.xlane.xlu0 %154
    %v156 = vrcp.pop 32.0
    %v157 = vmul.f32 %v155, %v156
    %v158 = vsub.f32 %v149, %v157
    %v159 = vmul.f32 %v158, %v158
    %v160 = vsel %vm152, %v159, 0.0
    %161 = vadd.xlane.f32.xlu0 %v160
    %v162 = vpop.xlane.xlu0 %161
    %v163 = vmul.f32 %v162, %v156
    %v164 = vadd.f32 %v163, 1e-05
    %v165 = vrsqrt.pop %v164
    %v166 = vmul.f32 %v158, %v165
    %v168 = vlaneseq
    %v169 = vshrl.u32 %v168, 7
    %v170 = vsub.s32 0, %v169
    %v171 = vrot.slane %v65, %v170
    %v173 = vmul.f32 %v166, %v171
    %v175 = vlaneseq
    %v176 = vshrl.u32 %v175, 7
    %v177 = vsub.s32 0, %v176
    %v178 = vrot.slane %v66, %v177
    %v180 = vadd.f32 %v173, %v178
    %v181 = vmax.f32 %v180, 0.0
    %v182 = vld [vmem:[%s7] sm:$0x3f]
    %v183 = vld [vmem:[%s8] sm:$0x1]
    %v184 = vld [vmem:[%s9] sm:$0x1]
    %v185 = vld [vmem:[%s10] sm:$0x1]
    %v186 = vld [vmem:[%s1] sm:$0xff]
    %v188 = vlaneseq
    %v189 = vshrl.u32 %v188, 7
    %v190 = vsub.s32 0, %v189
    %v191 = vrot.slane %v183, %v190
    %vm193 = vcmask 48128
    %v195 = vsel %vm193, %v186, 0
    %vm197 = vcmask 1045504
    %v199 = vsel %vm197, %v182, 0
    %201 = vmatprep.subr.mxu0 0.0
    %202 = vmatpush1.msra.mxu0 %v199
    %203 = vmatprep.subr.mxu0 0.0
    %204 = vmatpush1.msra.mxu0 0.0
    %205 = vmatprep.subr.mxu0 0.0
    %206 = vmatpush1.msra.mxu0 0.0
    %207 = vmatprep.subr.mxu0 0.0
    %208 = vmatpush1.msra.mxu0 0.0
    %209 = vmatprep.subr.mxu0 0.0
    %210 = vmatpush1.msra.mxu0 0.0
    %211 = vmatprep.subr.mxu0 0.0
    %212 = vmatpush1.msra.mxu0 0.0
    %213 = vmatprep.subr.mxu0 0.0
    %214 = vmatpush1.msra.mxu0 0.0
    %215 = vmatprep.subr.mxu0 0.0
    %216 = vmatpush1.msra.mxu0 0.0
    %217 = vmatprep.subr.mxu0 0.0
    %218 = vmatpush1.msra.mxu0 0.0
    %219 = vmatprep.subr.mxu0 0.0
    %220 = vmatpush1.msra.mxu0 0.0
    %221 = vmatprep.subr.mxu0 0.0
    %222 = vmatpush1.msra.mxu0 0.0
    %223 = vmatprep.subr.mxu0 0.0
    %224 = vmatpush1.msra.mxu0 0.0
    %225 = vmatprep.subr.mxu0 0.0
    %226 = vmatpush1.msra.mxu0 0.0
    %227 = vmatprep.subr.mxu0 0.0
    %228 = vmatpush1.msra.mxu0 0.0
    %229 = vmatprep.subr.mxu0 0.0
    %230 = vmatpush1.msra.mxu0 0.0
    %231 = vmatprep.subr.mxu0 0.0
    %232 = vmatpush1.msra.mxu0 0.0
    %233 = vmatprep.subr.mxu0 0.0
    %234 = vmatpush1.msra.mxu0 0.0
    %235 = vmatprep.subr.mxu0 0.0
    %236 = vmatpush1.msra.mxu0 0.0
    %237 = vmatprep.subr.mxu0 0.0
    %238 = vmatpush1.msra.mxu0 0.0
    %239 = vmatprep.subr.mxu0 0.0
    %240 = vmatpush1.msra.mxu0 0.0
    %241 = vmatprep.subr.mxu0 0.0
    %242 = vmatpush1.msra.mxu0 0.0
    %243 = vmatprep.subr.mxu0 0.0
    %244 = vmatpush1.msra.mxu0 0.0
    %245 = vmatprep.subr.mxu0 0.0
    %246 = vmatpush1.msra.mxu0 0.0
    %247 = vmatprep.subr.mxu0 0.0
    %248 = vmatpush1.msra.mxu0 0.0
    %249 = vmatprep.subr.mxu0 0.0
    %250 = vmatpush1.msra.mxu0 0.0
    %251 = vmatprep.subr.mxu0 0.0
    %252 = vmatpush1.msra.mxu0 0.0
    %253 = vmatprep.subr.mxu0 0.0
    %254 = vmatpush1.msra.mxu0 0.0
    %255 = vmatprep.subr.mxu0 0.0
    %256 = vmatpush1.msra.mxu0 0.0
    %257 = vmatprep.subr.mxu0 0.0
    %258 = vmatpush1.msra.mxu0 0.0
    %259 = vmatprep.subr.mxu0 0.0
    %260 = vmatpush1.msra.mxu0 0.0
    %261 = vmatprep.subr.mxu0 0.0
    %262 = vmatpush1.msra.mxu0 0.0
    %263 = vmatprep.subr.mxu0 0.0
    %264 = vmatpush1.msra.mxu0 0.0
    %265 = vmatprep.mubr.f32.mxu0 0.0
    %266 = vmatmul.mubr.f32.gmra.mrb[0].mxu0 %v195
    %v267 = vpop.f32.mrb[0].mxu0
    %v268 = vadd.f32 %v191, %v267
    %v269 = vpop.f32.mrb[0].mxu0
    %270 = vdwg.mxu0
    %v271 = vsel %vm152, %v268, 0.0
    %272 = vadd.xlane.f32.xlu0 %v271
    %v273 = vpop.xlane.xlu0 %272
    %v274 = vmul.f32 %v273, %v156
    %v275 = vsub.f32 %v268, %v274
    %v276 = vmul.f32 %v275, %v275
    %v277 = vsel %vm152, %v276, 0.0
    %278 = vadd.xlane.f32.xlu0 %v277
    %v279 = vpop.xlane.xlu0 %278
    %v280 = vmul.f32 %v279, %v156
    %v281 = vadd.f32 %v280, 1e-05
    %v282 = vrsqrt.pop %v281
    %v283 = vmul.f32 %v275, %v282
    %v285 = vlaneseq
    %v286 = vshrl.u32 %v285, 7
    %v287 = vsub.s32 0, %v286
    %v288 = vrot.slane %v184, %v287
    %v290 = vmul.f32 %v283, %v288
    %v292 = vlaneseq
    %v293 = vshrl.u32 %v292, 7
    %v294 = vsub.s32 0, %v293
    %v295 = vrot.slane %v185, %v294
    %v297 = vadd.f32 %v290, %v295
    %v298 = vmax.f32 %v297, 0.0
    %v299 = vld [vmem:[%s11] sm:$0xff]
    %v300 = vld [vmem:[%s11 + $0x8] sm:$0xff]
    %v301 = vld [vmem:[%s11 + $0x10] sm:$0xff]
    %v302 = vld [vmem:[%s11 + $0x18] sm:$0xff]
    %v303 = vld [vmem:[%s11 + $0x20] sm:$0xff]
    %v304 = vld [vmem:[%s11 + $0x28] sm:$0xff]
    %v305 = vld [vmem:[%s11 + $0x30] sm:$0xff]
    %v306 = vld [vmem:[%s11 + $0x38] sm:$0xff]
    %v307 = vld [vmem:[%s12] sm:$0x1]
    %309 = vrot.lane.b32.xlu0 %v298, 32
    %v310 = vpop.permute.xlu0 %309
    %v312 = vsel %vm152, %v181, %v310
    %v314 = vlaneseq
    %v315 = vshrl.u32 %v314, 7
    %v316 = vsub.s32 0, %v315
    %v317 = vrot.slane %v307, %v316
    %vm319 = vcmask 523264
    %v321 = vsel %vm319, %v312, 0
    %323 = vmatprep.subr.mxu0 0.0
    %324 = vmatpush1.msra.mxu0 %v299
    %325 = vmatprep.subr.mxu0 0.0
    %326 = vmatpush1.msra.mxu0 %v300
    %327 = vmatprep.subr.mxu0 0.0
    %328 = vmatpush1.msra.mxu0 %v301
    %329 = vmatprep.subr.mxu0 0.0
    %330 = vmatpush1.msra.mxu0 %v302
    %331 = vmatprep.subr.mxu0 0.0
    %332 = vmatpush1.msra.mxu0 %v303
    %333 = vmatprep.subr.mxu0 0.0
    %334 = vmatpush1.msra.mxu0 %v304
    %335 = vmatprep.subr.mxu0 0.0
    %336 = vmatpush1.msra.mxu0 %v305
    %337 = vmatprep.subr.mxu0 0.0
    %338 = vmatpush1.msra.mxu0 %v306
    %339 = vmatprep.subr.mxu0 0.0
    %340 = vmatpush1.msra.mxu0 0.0
    %341 = vmatprep.subr.mxu0 0.0
    %342 = vmatpush1.msra.mxu0 0.0
    %343 = vmatprep.subr.mxu0 0.0
    %344 = vmatpush1.msra.mxu0 0.0
    %345 = vmatprep.subr.mxu0 0.0
    %346 = vmatpush1.msra.mxu0 0.0
    %347 = vmatprep.subr.mxu0 0.0
    %348 = vmatpush1.msra.mxu0 0.0
    %349 = vmatprep.subr.mxu0 0.0
    %350 = vmatpush1.msra.mxu0 0.0
    %351 = vmatprep.subr.mxu0 0.0
    %352 = vmatpush1.msra.mxu0 0.0
    %353 = vmatprep.subr.mxu0 0.0
    %354 = vmatpush1.msra.mxu0 0.0
    %355 = vmatprep.subr.mxu0 0.0
    %356 = vmatpush1.msra.mxu0 0.0
    %357 = vmatprep.subr.mxu0 0.0
    %358 = vmatpush1.msra.mxu0 0.0
    %359 = vmatprep.subr.mxu0 0.0
    %360 = vmatpush1.msra.mxu0 0.0
    %361 = vmatprep.subr.mxu0 0.0
    %362 = vmatpush1.msra.mxu0 0.0
    %363 = vmatprep.subr.mxu0 0.0
    %364 = vmatpush1.msra.mxu0 0.0
    %365 = vmatprep.subr.mxu0 0.0
    %366 = vmatpush1.msra.mxu0 0.0
    %367 = vmatprep.subr.mxu0 0.0
    %368 = vmatpush1.msra.mxu0 0.0
    %369 = vmatprep.subr.mxu0 0.0
    %370 = vmatpush1.msra.mxu0 0.0
    %371 = vmatprep.subr.mxu0 0.0
    %372 = vmatpush1.msra.mxu0 0.0
    %373 = vmatprep.subr.mxu0 0.0
    %374 = vmatpush1.msra.mxu0 0.0
    %375 = vmatprep.subr.mxu0 0.0
    %376 = vmatpush1.msra.mxu0 0.0
    %377 = vmatprep.subr.mxu0 0.0
    %378 = vmatpush1.msra.mxu0 0.0
    %379 = vmatprep.subr.mxu0 0.0
    %380 = vmatpush1.msra.mxu0 0.0
    %381 = vmatprep.subr.mxu0 0.0
    %382 = vmatpush1.msra.mxu0 0.0
    %383 = vmatprep.subr.mxu0 0.0
    %384 = vmatpush1.msra.mxu0 0.0
    %385 = vmatprep.subr.mxu0 0.0
    %386 = vmatpush1.msra.mxu0 0.0
    %387 = vmatprep.mubr.f32.mxu0 0.0
    %388 = vmatmul.mubr.f32.gmra.mrb[0].mxu0 %v321
    %v389 = vpop.f32.mrb[0].mxu0
    %v390 = vadd.f32 %v317, %v389
    %v391 = vpop.f32.mrb[0].mxu0
    %392 = vdwg.mxu0
    %v393 = vld [vmem:[%s2] sm:$0xff]
    %v394 = vadd.f32 %v390, %v393
    %v395 = vld [vmem:[%s13] sm:$0x1]
    %v396 = vld [vmem:[%s14] sm:$0x1]
    %v397 = vld [vmem:[%s15] sm:$0xff]
    %v398 = vld [vmem:[%s15 + $0x8] sm:$0xff]
    %v399 = vld [vmem:[%s15 + $0x10] sm:$0xff]
    %v400 = vld [vmem:[%s15 + $0x18] sm:$0xff]
    %v401 = vld [vmem:[%s16] sm:$0x1]
    %v402 = vld [vmem:[%s17] sm:$0x1]
    %v403 = vld [vmem:[%s18] sm:$0x1]
    %v404 = vsel %vm152, %v394, 0.0
    %405 = vadd.xlane.f32.xlu0 %v404
    %v406 = vpop.xlane.xlu0 %405
    %v407 = vmul.f32 %v406, %v156
    %v408 = vsub.f32 %v394, %v407
    %v409 = vmul.f32 %v408, %v408
    %v410 = vsel %vm152, %v409, 0.0
    %411 = vadd.xlane.f32.xlu0 %v410
    %v412 = vpop.xlane.xlu0 %411
    %v413 = vmul.f32 %v412, %v156
    %v414 = vadd.f32 %v413, 1e-05
    %v415 = vrsqrt.pop %v414
    %v416 = vmul.f32 %v408, %v415
    %v418 = vlaneseq
    %v419 = vshrl.u32 %v418, 7
    %v420 = vsub.s32 0, %v419
    %v421 = vrot.slane %v395, %v420
    %v423 = vmul.f32 %v416, %v421
    %v425 = vlaneseq
    %v426 = vshrl.u32 %v425, 7
    %v427 = vsub.s32 0, %v426
    %v428 = vrot.slane %v396, %v427
    %v430 = vadd.f32 %v423, %v428
    %v431 = vmax.f32 %v430, 0.0
    %v433 = vlaneseq
    %v434 = vshrl.u32 %v433, 7
    %v435 = vsub.s32 0, %v434
    %v436 = vrot.slane %v401, %v435
    %v439 = vsel %vm152, %v431, 0
    %441 = vmatprep.subr.mxu0 0.0
    %442 = vmatpush1.msra.mxu0 %v397
    %443 = vmatprep.subr.mxu0 0.0
    %444 = vmatpush1.msra.mxu0 %v398
    %445 = vmatprep.subr.mxu0 0.0
    %446 = vmatpush1.msra.mxu0 %v399
    %447 = vmatprep.subr.mxu0 0.0
    %448 = vmatpush1.msra.mxu0 %v400
    %449 = vmatprep.subr.mxu0 0.0
    %450 = vmatpush1.msra.mxu0 0.0
    %451 = vmatprep.subr.mxu0 0.0
    %452 = vmatpush1.msra.mxu0 0.0
    %453 = vmatprep.subr.mxu0 0.0
    %454 = vmatpush1.msra.mxu0 0.0
    %455 = vmatprep.subr.mxu0 0.0
    %456 = vmatpush1.msra.mxu0 0.0
    %457 = vmatprep.subr.mxu0 0.0
    %458 = vmatpush1.msra.mxu0 0.0
    %459 = vmatprep.subr.mxu0 0.0
    %460 = vmatpush1.msra.mxu0 0.0
    %461 = vmatprep.subr.mxu0 0.0
    %462 = vmatpush1.msra.mxu0 0.0
    %463 = vmatprep.subr.mxu0 0.0
    %464 = vmatpush1.msra.mxu0 0.0
    %465 = vmatprep.subr.mxu0 0.0
    %466 = vmatpush1.msra.mxu0 0.0
    %467 = vmatprep.subr.mxu0 0.0
    %468 = vmatpush1.msra.mxu0 0.0
    %469 = vmatprep.subr.mxu0 0.0
    %470 = vmatpush1.msra.mxu0 0.0
    %471 = vmatprep.subr.mxu0 0.0
    %472 = vmatpush1.msra.mxu0 0.0
    %473 = vmatprep.subr.mxu0 0.0
    %474 = vmatpush1.msra.mxu0 0.0
    %475 = vmatprep.subr.mxu0 0.0
    %476 = vmatpush1.msra.mxu0 0.0
    %477 = vmatprep.subr.mxu0 0.0
    %478 = vmatpush1.msra.mxu0 0.0
    %479 = vmatprep.subr.mxu0 0.0
    %480 = vmatpush1.msra.mxu0 0.0
    %481 = vmatprep.subr.mxu0 0.0
    %482 = vmatpush1.msra.mxu0 0.0
    %483 = vmatprep.subr.mxu0 0.0
    %484 = vmatpush1.msra.mxu0 0.0
    %485 = vmatprep.subr.mxu0 0.0
    %486 = vmatpush1.msra.mxu0 0.0
    %487 = vmatprep.subr.mxu0 0.0
    %488 = vmatpush1.msra.mxu0 0.0
    %489 = vmatprep.subr.mxu0 0.0
    %490 = vmatpush1.msra.mxu0 0.0
    %491 = vmatprep.subr.mxu0 0.0
    %492 = vmatpush1.msra.mxu0 0.0
    %493 = vmatprep.subr.mxu0 0.0
    %494 = vmatpush1.msra.mxu0 0.0
    %495 = vmatprep.subr.mxu0 0.0
    %496 = vmatpush1.msra.mxu0 0.0
    %497 = vmatprep.subr.mxu0 0.0
    %498 = vmatpush1.msra.mxu0 0.0
    %499 = vmatprep.subr.mxu0 0.0
    %500 = vmatpush1.msra.mxu0 0.0
    %501 = vmatprep.subr.mxu0 0.0
    %502 = vmatpush1.msra.mxu0 0.0
    %503 = vmatprep.subr.mxu0 0.0
    %504 = vmatpush1.msra.mxu0 0.0
    %505 = vmatprep.mubr.f32.mxu0 0.0
    %506 = vmatmul.mubr.f32.gmra.mrb[0].mxu0 %v439
    %v507 = vpop.f32.mrb[0].mxu0
    %v508 = vadd.f32 %v436, %v507
    %v509 = vpop.f32.mrb[0].mxu0
    %510 = vdwg.mxu0
    %v511 = vsel %vm152, %v508, 0.0
    %512 = vadd.xlane.f32.xlu0 %v511
    %v513 = vpop.xlane.xlu0 %512
    %v514 = vmul.f32 %v513, %v156
    %v515 = vsub.f32 %v508, %v514
    %v516 = vmul.f32 %v515, %v515
    %v517 = vsel %vm152, %v516, 0.0
    %518 = vadd.xlane.f32.xlu0 %v517
    %v519 = vpop.xlane.xlu0 %518
    %v520 = vmul.f32 %v519, %v156
    %v521 = vadd.f32 %v520, 1e-05
    %v522 = vrsqrt.pop %v521
    %v523 = vmul.f32 %v515, %v522
    %v525 = vlaneseq
    %v526 = vshrl.u32 %v525, 7
    %v527 = vsub.s32 0, %v526
    %v528 = vrot.slane %v402, %v527
    %v530 = vmul.f32 %v523, %v528
    %v532 = vlaneseq
    %v533 = vshrl.u32 %v532, 7
    %v534 = vsub.s32 0, %v533
    %v535 = vrot.slane %v403, %v534
    %v537 = vadd.f32 %v530, %v535
    %538 = vst.msk [vmem:[#allocation2] sm:$0xff] %vm152, %v537
    // Predicated region
    $region78: #{tpu_custom_call.1} parent=1 // pred_check
      _
    $region79: #{tpu_custom_call.1} parent=1 // pred_check_branch
      %540 = sbr.rel (0) target = $region81
    $region80: #{tpu_custom_call.1} parent=1 // pred_region
      %s542 = ssub.s32 128, 128
      %543 = vsyncadd [#allocation3], %s542
      %s545 = sshll.u32 [#allocation2], 4
      %s546 = int_to_ptr.vmem [resolvable:$true] %s545
      %548 = dma.vmem_to_hbm [thread:$0]  %s546, 128, %s19, [#allocation3]
    $region81: #{tpu_custom_call.1} parent=1 // pred_fallthru
      _
    // Predicated region
    $region82: #{tpu_custom_call.1} parent=1 // pred_check
      _
    $region83: #{tpu_custom_call.1} parent=1 // pred_check_branch
      %550 = sbr.rel (0) target = $region85
    $region84: #{tpu_custom_call.1} parent=1 // pred_region
      %551 = dma.done [#allocation3], 128
    $region85: #{tpu_custom_call.1} parent=1 // pred_fallthru
      _
    %552 = vsyncpa [#allocation3], 1

</llo_original>
